<compile_context>
chip_gen: v6e
topology: v6e:2x2x1
jax: 0.10.0
libtpu: 0.0.40
codegen_flags: <defaults>
</compile_context>

<pallas_src>
import functools

import jax
import jax.numpy as jnp
from jax import lax
from jax.experimental import pallas as pl
from jax.experimental.pallas import tpu as pltpu


def _vmem_limit_bytes():
    # v7x has 64 MiB physical VMEM per TensorCore; v5e/v6e have 128 MiB.
    try:
        cap = int(pltpu.get_tpu_info().vmem_capacity_bytes)
    except Exception:
        cap = 128 << 20
    return (36 << 20) if cap <= (64 << 20) else (56 << 20)


_VMEM_LIMIT = _vmem_limit_bytes()


def _pick_tile(n, cap, pred=lambda d: True):
    """Largest divisor of n that is <= cap and satisfies pred.
    Falls back to the smallest divisor satisfying pred, then to n."""
    divs = [d for d in range(1, n + 1) if n % d == 0 and pred(d)]
    if not divs:
        return n
    fitting = [d for d in divs if d <= cap]
    return max(fitting) if fitting else min(divs)


# ----------------------------------------------------------------------------
# Kernel 1: ConvTranspose2d(k=2, s=2) as a row-tiled matmul with the pixel
# shuffle folded into the output placement.
#   out[n, 2y+dy, x, dx*Cout+co] = sum_ci prev[n, y, x, ci] * W[ci, co, dy, dx] + b[co]
# A contiguous reshape (N, 2H, W, 2*Cout) -> (N, 2H, 2W, Cout) then yields the
# upsampled NHWC tensor for free (no data movement).
# ----------------------------------------------------------------------------
def _convT_pixelshuffle_kernel(x_ref, w_ref, b_ref, o_ref, *, rh, width, c2):
    # x_ref: (rh*width, Cin) bf16   -- rh input rows of one image
    # w_ref: (2, Cin, 2*Cout) bf16  -- w_ref[dy][ci, dx*Cout + co]
    # b_ref: (1, 2*Cout) f32
    # o_ref: (1, 2*rh, width, 2*Cout)
    x = x_ref[...]
    rows = []
    for dy in range(2):
        y = jnp.dot(x, w_ref[dy], preferred_element_type=jnp.float32) + b_ref[...]
        rows.append(y.reshape(rh, 1, width, c2))
    out = jnp.concatenate(rows, axis=1).reshape(2 * rh, width, c2)
    o_ref[0] = out.astype(o_ref.dtype)


def conv_transpose2x2_s2(prev_nhwc, w_up, b_up, *, row_tile=None,
                         out_dtype=jnp.bfloat16):
    """prev_nhwc: (N,H,W,Cin); w_up: torch layout (Cin,Cout,2,2); b_up: (Cout,).
    Returns (N, 2H, 2W, Cout)."""
    N, H, W, Cin = prev_nhwc.shape
    Cout = w_up.shape[1]
    if row_tile is None:
        per_row = W * Cin * 2 + 2 * W * 2 * Cout * (2 + 4)
        row_tile = _pick_tile(H, max(1, (2 << 20) // max(per_row, 1)),
                              pred=lambda d: (d * W) % 8 == 0)
    rh = int(row_tile)
    assert H % rh == 0, (H, rh)
    n_rows = H // rh

    x2d = prev_nhwc.reshape(N * H * W, Cin).astype(jnp.bfloat16)
    # (Cin, Cout, dy, dx) -> (dy, Cin, dx, Cout) -> (2, Cin, 2*Cout)
    w3 = jnp.transpose(w_up, (2, 0, 3, 1)).reshape(2, Cin, 2 * Cout)
    w3 = w3.astype(jnp.bfloat16)
    b2 = jnp.tile(b_up, (2,)).reshape(1, 2 * Cout).astype(jnp.float32)

    kern = functools.partial(_convT_pixelshuffle_kernel,
                             rh=rh, width=W, c2=2 * Cout)
    out = pl.pallas_call(
        kern,
        out_shape=jax.ShapeDtypeStruct((N, 2 * H, W, 2 * Cout), out_dtype),
        grid=(N, n_rows),
        in_specs=[
            pl.BlockSpec((rh * W, Cin), lambda n, r: (n * n_rows + r, 0)),
            pl.BlockSpec((2, Cin, 2 * Cout), lambda n, r: (0, 0, 0)),
            pl.BlockSpec((1, 2 * Cout), lambda n, r: (0, 0)),
        ],
        out_specs=pl.BlockSpec((1, 2 * rh, W, 2 * Cout), lambda n, r: (n, r, 0, 0)),
        compiler_params=pltpu.CompilerParams(
            dimension_semantics=("parallel", "parallel"),
            vmem_limit_bytes=_VMEM_LIMIT,
        ),
    )(x2d, w3, b2)
    # (n, 2y+dy, x, dx*Cout+co) -> (N, 2H, 2W, Cout): contiguous, free reshape.
    return out.reshape(N, 2 * H, 2 * W, Cout)


# ----------------------------------------------------------------------------
# Kernel 2: fused [channel-concat of several inputs] -> 3x3 conv (pad=1, no
# bias) -> BatchNorm (folded scale/shift) -> ReLU, row-tiled with a 1-px halo.
# The concat is never materialized: each input contributes its own weight
# slice.  Per (input, ky, kx) one K=cin MXU matmul reads a shifted window
# straight off the input ref and accumulates into a VMEM scratch.
# ----------------------------------------------------------------------------
def _concat_conv3x3_bn_relu_kernel(*refs, n_in, th, width, cins, co_blk):
    x_refs = refs[:n_in]                       # (1, th+2, width+2, cin_j) bf16
    w_refs = refs[n_in:2 * n_in]               # (9, cin_j, co_blk) bf16
    s_ref, t_ref, o_ref, acc_ref = refs[2 * n_in:]

    acc_ref[...] = jnp.zeros_like(acc_ref)
    for j in range(n_in):
        cin = cins[j]
        xj, wj = x_refs[j], w_refs[j]
        for ky in range(3):
            for kx in range(3):
                patch = xj[0, ky:ky + th, kx:kx + width, :]      # (th, W, cin)
                patch = patch.reshape(th * width, cin)
                acc_ref[...] += jnp.dot(patch, wj[ky * 3 + kx],
                                        preferred_element_type=jnp.float32)
    y = acc_ref[...] * s_ref[...] + t_ref[...]          # folded BN (f32, VPU)
    o_ref[0] = jnp.maximum(y, 0.0).reshape(th, width, co_blk).astype(o_ref.dtype)


def concat_conv3x3_bn_relu(xs, ws, gamma, beta, mean, var, *, eps=1e-5,
                           row_tile=None, out_dtype=jnp.float32):
    """xs: list of NHWC inputs (same N,H,W); ws[j]: (3,3,cin_j,Cout) HWIO slice
    of the concatenated conv weight."""
    N, H, W, _ = xs[0].shape
    Cout = ws[0].shape[-1]
    cins = tuple(int(x.shape[-1]) for x in xs)

    # 256-wide output blocks feed the v6e/v7x MXU fully; fall back to 128 / full.
    co_blk = 256 if Cout % 256 == 0 else (128 if Cout % 128 == 0 else Cout)
    if row_tile is None:
        cin_tot = sum(cins)
        per_row = ((W + 2) * cin_tot * 2 * 2          # bf16 inputs, x2 buffers
                   + W * co_blk * 4                    # f32 scratch accumulator
                   + W * co_blk * 2 * 2)               # output, x2 buffers
        row_tile = _pick_tile(H, max(1, (6 << 20) // max(per_row, 1)))
    th = int(row_tile)
    assert H % th == 0, (H, th)
    n_rows = H // th
    n_co = Cout // co_blk

    scale_v = gamma / jnp.sqrt(var + eps)
    shift_v = beta - mean * scale_v
    scale = scale_v.reshape(1, Cout).astype(jnp.float32)
    shift = shift_v.reshape(1, Cout).astype(jnp.float32)

    # 1-pixel spatial halo (TODO(synk): have producers write padded buffers).
    xs_pad = [jnp.pad(x.astype(jnp.bfloat16), ((0, 0), (1, 1), (1, 1), (0, 0)))
              for x in xs]
    # HWIO (3,3,cin,Cout) -> (9, cin, Cout); row index ky*3 + kx.
    ws2 = [w.reshape(9, c, Cout).astype(jnp.bfloat16) for w, c in zip(ws, cins)]

    in_specs = (
        # Overlapping halo row windows: element-indexed start r*th, length th+2.
        [pl.BlockSpec((1, pl.Element(th + 2), W + 2, c),
                      lambda n, r, co: (n, r * th, 0, 0)) for c in cins]
        + [pl.BlockSpec((9, c, co_blk), lambda n, r, co: (0, 0, co)) for c in cins]
        + [pl.BlockSpec((1, co_blk), lambda n, r, co: (0, co)),
           pl.BlockSpec((1, co_blk), lambda n, r, co: (0, co))]
    )
    kern = functools.partial(_concat_conv3x3_bn_relu_kernel, n_in=len(xs),
                             th=th, width=W, cins=cins, co_blk=co_blk)
    return pl.pallas_call(
        kern,
        out_shape=jax.ShapeDtypeStruct((N, H, W, Cout), out_dtype),
        grid=(N, n_rows, n_co),
        in_specs=in_specs,
        out_specs=pl.BlockSpec((1, th, W, co_blk), lambda n, r, co: (n, r, 0, co)),
        scratch_shapes=[pltpu.VMEM((th * W, co_blk), jnp.float32)],
        compiler_params=pltpu.CompilerParams(
            dimension_semantics=("parallel", "parallel", "parallel"),
            vmem_limit_bytes=_VMEM_LIMIT,
        ),
    )(*xs_pad, *ws2, scale, shift)


# ----------------------------------------------------------------------------
# UpBlock forward (NCHW public interface, matching the torch module).
# ----------------------------------------------------------------------------
def upblock_forward(prev_nchw, skip_nchw, p, *, up_row_tile=None,
                    conv_row_tile=None):
    prev = jnp.transpose(prev_nchw, (0, 2, 3, 1))
    skip = jnp.transpose(skip_nchw, (0, 2, 3, 1))
    up = conv_transpose2x2_s2(prev, p["w_up"], p["b_up"], row_tile=up_row_tile)
    cup = up.shape[-1]
    # torch.cat([up, skip], dim=-3) is fused into the first conv kernel.
    x = concat_conv3x3_bn_relu(
        [up, skip],
        [p["w1"][:, :, :cup, :], p["w1"][:, :, cup:, :]],
        p["g1"], p["b1"], p["m1"], p["v1"],
        row_tile=conv_row_tile, out_dtype=jnp.bfloat16)
    x = concat_conv3x3_bn_relu(
        [x], [p["w2"]], p["g2"], p["b2"], p["m2"], p["v2"],
        row_tile=conv_row_tile, out_dtype=jnp.float32)
    return jnp.transpose(x, (0, 3, 1, 2))


# ----------------------------------------------------------------------------
# Plain-JAX reference (for correctness check).
# ----------------------------------------------------------------------------
def upblock_reference(prev_nchw, skip_nchw, p, eps=1e-5):
    prev = jnp.transpose(prev_nchw, (0, 2, 3, 1))
    skip = jnp.transpose(skip_nchw, (0, 2, 3, 1))
    N, H, W, _ = prev.shape
    Cup = p["w_up"].shape[1]
    t = jnp.einsum("nhwc,coab->nhawbo", prev, p["w_up"])
    up = t.reshape(N, 2 * H, 2 * W, Cup) + p["b_up"]
    x = jnp.concatenate([up, skip], axis=-1)

    def conv_bn_relu(x, w, g, b, m, v):
        y = lax.conv_general_dilated(
            x, w, window_strides=(1, 1), padding="SAME",
            dimension_numbers=("NHWC", "HWIO", "NHWC"))
        y = (y - m) / jnp.sqrt(v + eps) * g + b
        return jnp.maximum(y, 0.0)

    x = conv_bn_relu(x, p["w1"], p["g1"], p["b1"], p["m1"], p["v1"])
    x = conv_bn_relu(x, p["w2"], p["g2"], p["b2"], p["m2"], p["v2"])
    return jnp.transpose(x, (0, 3, 1, 2))


# ----------------------------------------------------------------------------
# Parameter construction (deterministic, synthetic).
# ----------------------------------------------------------------------------
def make_params(key, in_channels, out_channels):
    cin, cout = in_channels, out_channels
    cup = cin // 2
    ks = jax.random.split(key, 8)
    f = lambda k, s, scale=0.1: (scale * jax.random.normal(k, s)).astype(jnp.float32)
    return {
        # ConvTranspose2d: torch weight layout (Cin, Cout, 2, 2) + bias
        "w_up": f(ks[0], (cin, cup, 2, 2)),
        "b_up": f(ks[1], (cup,)),
        # conv1: 3x3, Cin -> Cout, stored HWIO for the kernel
        "w1": f(ks[2], (3, 3, cin, cout)),
        "g1": 1.0 + f(ks[3], (cout,)),
        "b1": f(ks[4], (cout,)),
        "m1": f(ks[5], (cout,)),
        "v1": 0.5 + jax.random.uniform(ks[6], (cout,), dtype=jnp.float32),
        # conv2: 3x3, Cout -> Cout
        "w2": f(ks[7], (3, 3, cout, cout)),
        "g2": jnp.ones((cout,), jnp.float32),
        "b2": jnp.zeros((cout,), jnp.float32),
        "m2": jnp.zeros((cout,), jnp.float32),
        "v2": jnp.ones((cout,), jnp.float32),
    }


if __name__ == "__main__":
    in_channels, out_channels = 8, 8
    N, H, W = 2, 8, 8                     # prev spatial; skip is 2H x 2W

    key = jax.random.PRNGKey(0)
    kp, kprev, kskip = jax.random.split(key, 3)
    params = make_params(kp, in_channels, out_channels)

    prev = jax.random.normal(kprev, (N, in_channels, H, W), dtype=jnp.float32)
    skip = jax.random.normal(kskip, (N, in_channels // 2, 2 * H, 2 * W),
                             dtype=jnp.float32)

    # Small explicit row tiles so the test exercises multi-tile halo indexing.
    out = jax.block_until_ready(
        upblock_forward(prev, skip, params, up_row_tile=4, conv_row_tile=8))
    ref = jax.block_until_ready(upblock_reference(prev, skip, params))

    assert out.shape == (N, out_channels, 2 * H, 2 * W), out.shape
    # bf16 MXU operands + bf16 inter-kernel activations -> ~1e-2 level error.
    if not jnp.allclose(out, ref, atol=3e-2, rtol=3e-2):
        err = float(jnp.max(jnp.abs(out - ref)))
        raise AssertionError(
            f"Pallas UpBlock does not match JAX reference (max abs err {err})")
    print("KERNEL_OK")
</pallas_src>

<mosaic_0001>
module attributes {stable_mosaic.version = 11 : i64} {
  func.func @_convT_pixelshuffle_kernel(%arg0: i32, %arg1: i32, %arg2: memref<32x8xbf16, #tpu.memory_space<vmem>>, %arg3: memref<2x8x8xbf16, #tpu.memory_space<vmem>>, %arg4: memref<1x8xf32, #tpu.memory_space<vmem>>, %arg5: memref<1x8x8x8xbf16, #tpu.memory_space<vmem>>) attributes {dimension_semantics = [#tpu.dimension_semantics<parallel>, #tpu.dimension_semantics<parallel>], iteration_bounds = array<i64: 2, 2>, scalar_prefetch = 0 : i64, scratch_operands = 0 : i64, tpu.core_type = #tpu.core_type<tc>, window_params = [{transform_indices = @transform_0, window_bounds = array<i64: 32, 8>}, {pipeline_mode = #tpu.pipeline_mode<synchronous>, transform_indices = @transform_1, window_bounds = array<i64: 2, 8, 8>}, {pipeline_mode = #tpu.pipeline_mode<synchronous>, transform_indices = @transform_2, window_bounds = array<i64: 1, 8>}, {transform_indices = @transform_3, window_bounds = array<i64: 1, 8, 8, 8>}]} {
    %c0 = arith.constant 0 : index
    %c0_0 = arith.constant 0 : index
    %0 = vector.load %arg2[%c0, %c0_0] : memref<32x8xbf16, #tpu.memory_space<vmem>>, vector<32x8xbf16>
    %c0_1 = arith.constant 0 : index
    %c0_2 = arith.constant 0 : index
    %c0_3 = arith.constant 0 : index
    %1 = vector.load %arg3[%c0_1, %c0_2, %c0_3] : memref<2x8x8xbf16, #tpu.memory_space<vmem>>, vector<1x8x8xbf16>
    %2 = vector.shape_cast %1 : vector<1x8x8xbf16> to vector<8x8xbf16>
    %cst = arith.constant dense<0.000000e+00> : vector<32x8xf32>
    %3 = tpu.matmul %0, %2, %cst {dimension_numbers = #tpu.dot_dimension_numbers<[1], [0], [0], [1], [0, 0, 1, 1], [], []>} : vector<32x8xbf16>, vector<8x8xbf16>, vector<32x8xf32> -> vector<32x8xf32>
    %c0_4 = arith.constant 0 : index
    %c0_5 = arith.constant 0 : index
    %4 = vector.load %arg4[%c0_4, %c0_5] : memref<1x8xf32, #tpu.memory_space<vmem>>, vector<1x8xf32>
    %5 = vector.broadcast %4 : vector<1x8xf32> to vector<32x8xf32>
    %6 = arith.addf %3, %5 : vector<32x8xf32>
    %7 = vector.shape_cast %6 : vector<32x8xf32> to vector<4x1x8x8xf32>
    %c1 = arith.constant 1 : index
    %c0_6 = arith.constant 0 : index
    %c0_7 = arith.constant 0 : index
    %8 = vector.load %arg3[%c1, %c0_6, %c0_7] : memref<2x8x8xbf16, #tpu.memory_space<vmem>>, vector<1x8x8xbf16>
    %9 = vector.shape_cast %8 : vector<1x8x8xbf16> to vector<8x8xbf16>
    %cst_8 = arith.constant dense<0.000000e+00> : vector<32x8xf32>
    %10 = tpu.matmul %0, %9, %cst_8 {dimension_numbers = #tpu.dot_dimension_numbers<[1], [0], [0], [1], [0, 0, 1, 1], [], []>} : vector<32x8xbf16>, vector<8x8xbf16>, vector<32x8xf32> -> vector<32x8xf32>
    %c0_9 = arith.constant 0 : index
    %c0_10 = arith.constant 0 : index
    %11 = vector.load %arg4[%c0_9, %c0_10] : memref<1x8xf32, #tpu.memory_space<vmem>>, vector<1x8xf32>
    %12 = vector.broadcast %11 : vector<1x8xf32> to vector<32x8xf32>
    %13 = arith.addf %10, %12 : vector<32x8xf32>
    %14 = vector.shape_cast %13 : vector<32x8xf32> to vector<4x1x8x8xf32>
    %15 = tpu.concatenate %7, %14 in 1 : vector<4x1x8x8xf32>, vector<4x1x8x8xf32> -> vector<4x2x8x8xf32>
    %16 = vector.shape_cast %15 : vector<4x2x8x8xf32> to vector<8x8x8xf32>
    %17 = arith.truncf %16 : vector<8x8x8xf32> to vector<8x8x8xbf16>
    %c0_11 = arith.constant 0 : index
    %c0_12 = arith.constant 0 : index
    %c0_13 = arith.constant 0 : index
    %c0_14 = arith.constant 0 : index
    %18 = vector.load %arg5[%c0_11, %c0_12, %c0_13, %c0_14] : memref<1x8x8x8xbf16, #tpu.memory_space<vmem>>, vector<1x8x8x8xbf16>
    %19 = vector.shape_cast %18 : vector<1x8x8x8xbf16> to vector<8x8x8xbf16>
    %20 = vector.shape_cast %17 : vector<8x8x8xbf16> to vector<1x8x8x8xbf16>
    tpu.vector_store %arg5[%c0_11, %c0_12, %c0_13, %c0_14], %20 {strides = array<i32>} : memref<1x8x8x8xbf16, #tpu.memory_space<vmem>>, vector<1x8x8x8xbf16>,
    return
  }
  func.func @transform_0(%arg0: i32, %arg1: i32) -> (i32, i32) {
    %c2_i32 = arith.constant 2 : i32
    %0 = arith.muli %arg0, %c2_i32 : i32
    %1 = arith.addi %0, %arg1 : i32
    %c0_i32 = arith.constant 0 : i32
    %c0_i32_0 = arith.constant 0 : i32
    return %1, %c0_i32 : i32, i32
  }
  func.func @transform_1(%arg0: i32, %arg1: i32) -> (i32, i32, i32) {
    %c0_i32 = arith.constant 0 : i32
    %c0_i32_0 = arith.constant 0 : i32
    %c0_i32_1 = arith.constant 0 : i32
    %c0_i32_2 = arith.constant 0 : i32
    return %c0_i32, %c0_i32_0, %c0_i32_1 : i32, i32, i32
  }
  func.func @transform_2(%arg0: i32, %arg1: i32) -> (i32, i32) {
    %c0_i32 = arith.constant 0 : i32
    %c0_i32_0 = arith.constant 0 : i32
    %c0_i32_1 = arith.constant 0 : i32
    return %c0_i32, %c0_i32_0 : i32, i32
  }
  func.func @transform_3(%arg0: i32, %arg1: i32) -> (i32, i32, i32, i32) {
    %c0_i32 = arith.constant 0 : i32
    %c0_i32_0 = arith.constant 0 : i32
    %c0_i32_1 = arith.constant 0 : i32
    return %arg0, %arg1, %c0_i32, %c0_i32_0 : i32, i32, i32, i32
  }
}

</mosaic_0001>

<llo_original>
// kernel: tpu_custom_call.1
$region0: #{tpu_custom_call.1}
  #allocation0 [shape = 'u32[]', space=smem, size = 0x4, offset = 0x4, fixed_abs, tag = 'smem constant byte address 0x4 - core index']
  #allocation1 [shape = 'u32[144,128]{1,0:T(1,128)}', space=vmem, size = 0x12000, scoped, tag = 'internal scratch']
  %s0 = inlined_call_operand.vmem [shape: bf16[128,8], index: 0, kind: input, shape index: {}]
  %s1 = inlined_call_operand.vmem [shape: bf16[2,8,8], index: 1, kind: input, shape index: {}]
  %s2 = inlined_call_operand.vmem [shape: f32[1,8], index: 2, kind: input, shape index: {}]
  %s3 = inlined_call_operand.vmem [shape: bf16[2,16,8,8], index: 3, kind: output, shape index: {}]
  %s4 = sld [smem:[#allocation0]]
  $region45: #{tpu_custom_call.1} parent=0
    _
  %s6 = ssub.s32 1, %s4
  %s7 = scalar_select 0, %s6, %s4
  loop: start=0, step=1, limit=6
  $region2: #{tpu_custom_call.1} parent=0 // loop_pre_header
    _
  $region3: #{tpu_custom_call.1} parent=0 // loop_header
    %s9 = sphi 0, %s13
    %p10 = scmp.ge.s32.totalorder %s9, 6
    %s16 = sphi 0, %s28
    %s17 = sphi 0, %s24
    %s18 = sphi 0, %s16
    %s19 = sphi 0, %s17
    %s20 = sphi 0, %s18
    %s21 = sphi 0, %s19
    %s35 = sphi 0, %s37
    %s38 = sphi 0, %s35
    %s39 = sphi 0, %s38
    %s55 = sphi 0, %s39
    %s59 = sphi 0, %s59
    %s61 = sphi 0, %s59
    %s62 = sphi 0, %s61
    %s76 = sphi 0, %s62
    %s80 = sphi 0, %s80
    %s82 = sphi 0, %s80
    %s83 = sphi 0, %s82
    %s97 = sphi 0, %s83
    %s105 = sphi 0, %s107
    %s108 = sphi 0, %s105
    %s109 = sphi 0, %s108
    %s125 = sphi 0, %s109
  $region4: #{tpu_custom_call.1} parent=0 // loop_header_branch
    %12 = sbr.rel (%p10) target = $region8
  $region5: #{tpu_custom_call.1} parent=0 // loop_body
    %s14 = ssub.s32 %s9, 1
    %s15 = ssub.s32 %s9, 2
    %s22 = sadd.s32 1, %s17
    %p23 = scmp.ge.s32.totalorder %s22, 2
    %s24 = scalar_select %p23, 0, %s22
    %s25 = sadd.s32 1, %s16
    %s26 = scalar_select %p23, %s25, %s16
    %p27 = scmp.ge.s32.totalorder %s26, 2
    %s28 = scalar_select %p27, 0, %s26
    %s29 = smul.u32 %s16, 2
    %s30 = sadd.s32 %s29, %s17
    %s31 = smul.u32 %s28, 2
    %s32 = sadd.s32 %s31, %s24
    %s33 = ssub.s32 %s30, %s32
    %p34 = scmp.eq.s32.totalorder %s33, 0
    %s36 = sadd.s32 %s35, 1
    %s37 = scalar_select %p34, %s35, %s36
    %p40 = pneg %p34
    %p41 = scmp.eq.s32.totalorder %s9, 3
    %p42 = por %p40, %p41
    %p43 = scmp.ne.s32.totalorder %s35, %s38
    %p44 = scmp.eq.s32.totalorder %s9, 0
    %p45 = por %p43, %p44
    %p46 = scmp.ne.s32.totalorder %s35, %s38
    %p47 = scmp.eq.s32.totalorder %s14, 3
    %p48 = por %p46, %p47
    %p49 = scmp.ne.s32.totalorder %s38, %s39
    %p50 = scmp.eq.s32.totalorder %s14, 0
    %p51 = por %p49, %p50
    %p52 = scmp.ne.s32.totalorder %s38, %s39
    %p53 = scmp.eq.s32.totalorder %s15, 3
    %p54 = por %p52, %p53
    %p56 = scmp.ne.s32.totalorder %s39, %s55
    %p57 = scmp.eq.s32.totalorder %s15, 0
    %p58 = por %p56, %p57
    %s60 = sadd.s32 %s59, 1
    %p63 = scmp.eq.s32.totalorder %s9, 3
    %p64 = scmp.ne.s32.totalorder %s59, %s61
    %p65 = scmp.eq.s32.totalorder %s9, 0
    %p66 = por %p64, %p65
    %p67 = scmp.ne.s32.totalorder %s59, %s61
    %p68 = scmp.eq.s32.totalorder %s14, 3
    %p69 = por %p67, %p68
    %p70 = scmp.ne.s32.totalorder %s61, %s62
    %p71 = scmp.eq.s32.totalorder %s14, 0
    %p72 = por %p70, %p71
    %p73 = scmp.ne.s32.totalorder %s61, %s62
    %p74 = scmp.eq.s32.totalorder %s15, 3
    %p75 = por %p73, %p74
    %p77 = scmp.ne.s32.totalorder %s62, %s76
    %p78 = scmp.eq.s32.totalorder %s15, 0
    %p79 = por %p77, %p78
    %s81 = sadd.s32 %s80, 1
    %p84 = scmp.eq.s32.totalorder %s9, 3
    %p85 = scmp.ne.s32.totalorder %s80, %s82
    %p86 = scmp.eq.s32.totalorder %s9, 0
    %p87 = por %p85, %p86
    %p88 = scmp.ne.s32.totalorder %s80, %s82
    %p89 = scmp.eq.s32.totalorder %s14, 3
    %p90 = por %p88, %p89
    %p91 = scmp.ne.s32.totalorder %s82, %s83
    %p92 = scmp.eq.s32.totalorder %s14, 0
    %p93 = por %p91, %p92
    %p94 = scmp.ne.s32.totalorder %s82, %s83
    %p95 = scmp.eq.s32.totalorder %s15, 3
    %p96 = por %p94, %p95
    %p98 = scmp.ne.s32.totalorder %s83, %s97
    %p99 = scmp.eq.s32.totalorder %s15, 0
    %p100 = por %p98, %p99
    %s101 = ssub.s32 %s16, %s28
    %s102 = ssub.s32 %s17, %s24
    %s103 = sor.u32 %s101, %s102
    %p104 = scmp.eq.s32.totalorder %s103, 0
    %s106 = sadd.s32 %s105, 1
    %s107 = scalar_select %p104, %s105, %s106
    %p110 = pneg %p104
    %p111 = scmp.eq.s32.totalorder %s9, 3
    %p112 = por %p110, %p111
    %p113 = scmp.ne.s32.totalorder %s105, %s108
    %p114 = scmp.eq.s32.totalorder %s9, 0
    %p115 = por %p113, %p114
    %p116 = scmp.ne.s32.totalorder %s105, %s108
    %p117 = scmp.eq.s32.totalorder %s14, 3
    %p118 = por %p116, %p117
    %p119 = scmp.ne.s32.totalorder %s108, %s109
    %p120 = scmp.eq.s32.totalorder %s14, 0
    %p121 = por %p119, %p120
    %p122 = scmp.ne.s32.totalorder %s108, %s109
    %p123 = scmp.eq.s32.totalorder %s15, 3
    %p124 = por %p122, %p123
    %p126 = scmp.ne.s32.totalorder %s109, %s125
    %p127 = scmp.eq.s32.totalorder %s15, 0
    %p128 = por %p126, %p127
    %p129 = scmp.le.s32.totalorder 1, %s9
    %p130 = scmp.lt.s32.totalorder %s9, 5
    %p131 = pnand %p129, %p130
    %p132 = pneg %p131
    // Predicated region
    $region9: #{tpu_custom_call.1} parent=5 // pred_check
      _
    $region10: #{tpu_custom_call.1} parent=5 // pred_check_branch
      %134 = sbr.rel (%p131) target = $region12
    $region11: #{tpu_custom_call.1} parent=5 // pred_region
      %s135 = ssub.s32 %s9, 1
      // Predicated region
      $region13: #{tpu_custom_call.1} parent=11 // pred_check
        %p136 = pneg %p72
      $region14: #{tpu_custom_call.1} parent=11 // pred_check_branch
        %138 = sbr.rel (%p136) target = $region16
      $region15: #{tpu_custom_call.1} parent=11 // pred_region
        _
      $region16: #{tpu_custom_call.1} parent=11 // pred_fallthru
        _
      // Predicated region
      $region17: #{tpu_custom_call.1} parent=11 // pred_check
        %p139 = pneg %p93
      $region18: #{tpu_custom_call.1} parent=11 // pred_check_branch
        %141 = sbr.rel (%p139) target = $region20
      $region19: #{tpu_custom_call.1} parent=11 // pred_region
        _
      $region20: #{tpu_custom_call.1} parent=11 // pred_fallthru
        _
    $region12: #{tpu_custom_call.1} parent=5 // pred_fallthru
      _
    %p142 = scmp.lt.s32.totalorder %s9, 4
    // Predicated region
    $region21: #{tpu_custom_call.1} parent=5 // pred_check
      %p143 = pneg %p142
    $region22: #{tpu_custom_call.1} parent=5 // pred_check_branch
      %145 = sbr.rel (%p143) target = $region24
    $region23: #{tpu_custom_call.1} parent=5 // pred_region
      // Predicated region
      $region25: #{tpu_custom_call.1} parent=23 // pred_check
        %p146 = pneg %p45
      $region26: #{tpu_custom_call.1} parent=23 // pred_check_branch
        %148 = sbr.rel (%p146) target = $region28
      $region27: #{tpu_custom_call.1} parent=23 // pred_region
        %s149 = smul.u32 %s16, 2
        %s150 = sadd.s32 %s149, %s17
        %s151 = smul.u32 4, %s150
        %p152 = scmp.lt.s32.totalorder %s151, 15
        %s153 = scalar_select %p152, %s151, 15
        %s154 = smul.addr %s153, 4
        %s155 = scalar_lea.vmem %s0, %s154
        %s156 = smul.u32 %s16, 2
        %s157 = sadd.s32 %s156, %s17
        %s158 = smul.u32 4, %s157
      $region28: #{tpu_custom_call.1} parent=23 // pred_fallthru
        _
    $region24: #{tpu_custom_call.1} parent=5 // pred_fallthru
      _
    %p159 = scmp.le.s32.totalorder 1, %s9
    %p160 = scmp.lt.s32.totalorder %s9, 5
    %p161 = pnand %p159, %p160
    %p162 = pneg %p161
    // Predicated region
    $region29: #{tpu_custom_call.1} parent=5 // pred_check
      _
    $region30: #{tpu_custom_call.1} parent=5 // pred_check_branch
      %164 = sbr.rel (%p161) target = $region32
    $region31: #{tpu_custom_call.1} parent=5 // pred_region
      %s165 = ssub.s32 %s9, 1
      %s166 = smul.u32 %s18, 2
      %s167 = sadd.s32 %s166, %s19
      %s168 = smul.u32 4, %s167
      %p169 = scmp.lt.s32.totalorder %s168, 15
      %s170 = scalar_select %p169, %s168, 15
      %s171 = smul.addr %s170, 4
      %s172 = scalar_lea.vmem %s0, %s171
      %p173 = pneg %p51
      %p174 = pneg %p48
      %p175 = pneg %p72
      %p176 = pneg %p69
      %p177 = pneg %p93
      %p178 = pneg %p90
      %p179 = pneg %p121
      %p180 = pneg %p118
      %s181 = smul.u32 8, %s19
      %p182 = scmp.lt.s32.totalorder %s18, 1
      %s183 = scalar_select %p182, %s18, 1
      %p184 = scmp.lt.s32.totalorder %s181, 15
      %s185 = scalar_select %p184, %s181, 15
      %s186 = smul.addr %s183, 16
      %s187 = sadd.s32 %s185, %s186
      %s188 = smul.addr %s187, 4
      %s189 = scalar_lea.vmem %s3, %s188
      %s190 = smul.u32 %s18, 2
      %s191 = sadd.s32 %s190, %s19
      %s192 = smul.u32 4, %s191
      %p193 = scmp.lt.s32.totalorder %s192, 15
      %s194 = scalar_select %p193, %s192, 15
      %s195 = smul.addr %s194, 4
      %s196 = scalar_lea.vmem %s0, %s195
      %s197 = smul.u32 %s18, 2
      %s198 = sadd.s32 %s197, %s19
      %s199 = smul.u32 4, %s198
      %s200 = smul.u32 8, %s19
      %p201 = scmp.lt.s32.totalorder %s18, 1
      %s202 = scalar_select %p201, %s18, 1
      %p203 = scmp.lt.s32.totalorder %s200, 15
      %s204 = scalar_select %p203, %s200, 15
      %s205 = smul.addr %s202, 16
      %s206 = sadd.s32 %s204, %s205
      %s207 = smul.addr %s206, 4
      %s208 = scalar_lea.vmem %s3, %s207
      %s209 = smul.u32 8, %s19
      %v211 = vld [vmem:[%s196] sm:$0xf]
      %v212 = vld [vmem:[%s196 + $0x4] sm:$0xf]
      %v213 = vld [vmem:[%s196 + $0x8] sm:$0xf]
      %v214 = vld [vmem:[%s196 + $0xc] sm:$0xf]
      %v215 = vld [vmem:[%s1] sm:$0xf]
      %v216 = vld [vmem:[%s2] sm:$0x1]
      %v218 = vlaneseq
      %v219 = vshrl.u32 %v218, 7
      %v220 = vsub.s32 0, %v219
      %v221 = vrot.slane %v216, %v220
      %v227 = vunpack.c.l.b16 %v211
      %v228 = vunpack.c.l.b16 %v212
      %v229 = vunpack.c.l.b16 %v213
      %v230 = vunpack.c.l.b16 %v214
      %v231 = vpack.c.b16 %v228, %v227
      %v232 = vpack.c.b16 %v230, %v229
      %vm233 = vcmask 64512
      %v235 = vsel %vm233, %v231, 0
      %v238 = vsel %vm233, %v232, 0
      %vm240 = vcmask 1043456
      %v242 = vsel %vm240, %v215, 0
      %244 = vmatprep.subr.bf16.mxu0 0
      %245 = vmatpush1.bf16.msra.mxu0 0
      %246 = vmatprep.subr.bf16.mxu0 0
      %247 = vmatpush1.bf16.msra.mxu0 0
      %248 = vmatprep.subr.bf16.mxu0 0
      %249 = vmatpush1.bf16.msra.mxu0 0
      %250 = vmatprep.subr.bf16.mxu0 0
      %251 = vmatpush1.bf16.msra.mxu0 0
      %252 = vmatprep.subr.bf16.mxu0 0
      %253 = vmatpush1.bf16.msra.mxu0 0
      %254 = vmatprep.subr.bf16.mxu0 0
      %255 = vmatpush1.bf16.msra.mxu0 0
      %256 = vmatprep.subr.bf16.mxu0 0
      %257 = vmatpush1.bf16.msra.mxu0 0
      %258 = vmatprep.subr.bf16.mxu0 0
      %259 = vmatpush1.bf16.msra.mxu0 %v242
      %260 = vmatprep.subr.bf16.mxu0 0
      %261 = vmatpush2.bf16.msra.mxu0 0
      %262 = vmatprep.subr.bf16.mxu0 0
      %263 = vmatpush2.bf16.msra.mxu0 0
      %264 = vmatprep.subr.bf16.mxu0 0
      %265 = vmatpush2.bf16.msra.mxu0 0
      %266 = vmatprep.subr.bf16.mxu0 0
      %267 = vmatpush2.bf16.msra.mxu0 0
      %268 = vmatprep.subr.bf16.mxu0 0
      %269 = vmatpush2.bf16.msra.mxu0 0
      %270 = vmatprep.subr.bf16.mxu0 0
      %271 = vmatpush2.bf16.msra.mxu0 0
      %272 = vmatprep.subr.bf16.mxu0 0
      %273 = vmatpush2.bf16.msra.mxu0 0
      %274 = vmatprep.subr.bf16.mxu0 0
      %275 = vmatpush2.bf16.msra.mxu0 0
      %276 = vmatprep.mubr.bf16.mxu0 0
      %277 = vmatmul.mubr.bf16.gmra.mxu0 %v235
      %v278 = vpop.f32.mrf.mxu0
      %v279 = vadd.f32 %v221, %v278
      %v280 = vpop.f32.mrf.mxu0
      %v281 = vpop.f32.mrf.mxu0
      %v282 = vadd.f32 %v221, %v281
      %v283 = vpop.f32.mrf.mxu0
      %284 = vmatprep.mubr.bf16.mxu0 0
      %285 = vmatmul.mubr.bf16.gmra.mxu0 %v238
      %v286 = vpop.f32.mrf.mxu0
      %v287 = vadd.f32 %v221, %v286
      %v288 = vpop.f32.mrf.mxu0
      %v289 = vpop.f32.mrf.mxu0
      %v290 = vadd.f32 %v221, %v289
      %v291 = vpop.f32.mrf.mxu0
      %292 = vdwg.mxu0
      %s293 = scalar_lea.vmem %s1, 4
      %v294 = vld [vmem:[%s293] sm:$0xf]
      %v296 = vsel %vm240, %v294, 0
      %298 = vmatprep.subr.bf16.mxu0 0
      %299 = vmatpush1.bf16.msra.mxu0 0
      %300 = vmatprep.subr.bf16.mxu0 0
      %301 = vmatpush1.bf16.msra.mxu0 0
      %302 = vmatprep.subr.bf16.mxu0 0
      %303 = vmatpush1.bf16.msra.mxu0 0
      %304 = vmatprep.subr.bf16.mxu0 0
      %305 = vmatpush1.bf16.msra.mxu0 0
      %306 = vmatprep.subr.bf16.mxu0 0
      %307 = vmatpush1.bf16.msra.mxu0 0
      %308 = vmatprep.subr.bf16.mxu0 0
      %309 = vmatpush1.bf16.msra.mxu0 0
      %310 = vmatprep.subr.bf16.mxu0 0
      %311 = vmatpush1.bf16.msra.mxu0 0
      %312 = vmatprep.subr.bf16.mxu0 0
      %313 = vmatpush1.bf16.msra.mxu0 %v296
      %314 = vmatprep.subr.bf16.mxu0 0
      %315 = vmatpush2.bf16.msra.mxu0 0
      %316 = vmatprep.subr.bf16.mxu0 0
      %317 = vmatpush2.bf16.msra.mxu0 0
      %318 = vmatprep.subr.bf16.mxu0 0
      %319 = vmatpush2.bf16.msra.mxu0 0
      %320 = vmatprep.subr.bf16.mxu0 0
      %321 = vmatpush2.bf16.msra.mxu0 0
      %322 = vmatprep.subr.bf16.mxu0 0
      %323 = vmatpush2.bf16.msra.mxu0 0
      %324 = vmatprep.subr.bf16.mxu0 0
      %325 = vmatpush2.bf16.msra.mxu0 0
      %326 = vmatprep.subr.bf16.mxu0 0
      %327 = vmatpush2.bf16.msra.mxu0 0
      %328 = vmatprep.subr.bf16.mxu0 0
      %329 = vmatpush2.bf16.msra.mxu0 0
      %330 = vmatprep.mubr.bf16.mxu0 0
      %331 = vmatmul.mubr.bf16.gmra.mxu0 %v235
      %v332 = vpop.f32.mrf.mxu0
      %v333 = vadd.f32 %v221, %v332
      %v334 = vpop.f32.mrf.mxu0
      %v335 = vpop.f32.mrf.mxu0
      %v336 = vadd.f32 %v221, %v335
      %v337 = vpop.f32.mrf.mxu0
      %338 = vmatprep.mubr.bf16.mxu0 0
      %339 = vmatmul.mubr.bf16.gmra.mxu0 %v238
      %v340 = vpop.f32.mrf.mxu0
      %v341 = vadd.f32 %v221, %v340
      %v342 = vpop.f32.mrf.mxu0
      %v343 = vpop.f32.mrf.mxu0
      %v344 = vadd.f32 %v221, %v343
      %v345 = vpop.f32.mrf.mxu0
      %346 = vdwg.mxu0
      %v347 = vpack.c.bf16 %v279, %v279
      %v348 = vpack.c.bf16 %v333, %v333
      %v349 = vpack.c.bf16 %v282, %v282
      %v350 = vpack.c.bf16 %v336, %v336
      %v351 = vpack.c.bf16 %v287, %v287
      %v352 = vpack.c.bf16 %v341, %v341
      %v353 = vpack.c.bf16 %v290, %v290
      %v354 = vpack.c.bf16 %v344, %v344
      %vm355 = vcmask 60416
      %356 = vst.msk [vmem:[%s208] sm:$0xf] %vm355, %v347
      %357 = vst.msk [vmem:[%s208 + $0x4] sm:$0xf] %vm355, %v348
      %358 = vst.msk [vmem:[%s208 + $0x8] sm:$0xf] %vm355, %v349
      %359 = vst.msk [vmem:[%s208 + $0xc] sm:$0xf] %vm355, %v350
      %360 = vst.msk [vmem:[%s208 + $0x10] sm:$0xf] %vm355, %v351
      %361 = vst.msk [vmem:[%s208 + $0x14] sm:$0xf] %vm355, %v352
      %362 = vst.msk [vmem:[%s208 + $0x18] sm:$0xf] %vm355, %v353
      %363 = vst.msk [vmem:[%s208 + $0x1c] sm:$0xf] %vm355, %v354
      %s364 = smul.u32 8, %s19
      %p365 = scmp.lt.s32.totalorder %s18, 1
      %s366 = scalar_select %p365, %s18, 1
      %p367 = scmp.lt.s32.totalorder %s364, 15
      %s368 = scalar_select %p367, %s364, 15
      %s369 = smul.addr %s366, 16
      %s370 = sadd.s32 %s368, %s369
      %s371 = smul.addr %s370, 4
      %s372 = scalar_lea.vmem %s3, %s371
      // Predicated region
      $region33: #{tpu_custom_call.1} parent=31 // pred_check
        %p373 = pneg %p118
      $region34: #{tpu_custom_call.1} parent=31 // pred_check_branch
        %375 = sbr.rel (%p373) target = $region36
      $region35: #{tpu_custom_call.1} parent=31 // pred_region
        %s376 = smul.u32 8, %s19
      $region36: #{tpu_custom_call.1} parent=31 // pred_fallthru
        _
    $region32: #{tpu_custom_call.1} parent=5 // pred_fallthru
      _
    %p377 = scmp.le.s32.totalorder 2, %s9
    // Predicated region
    $region37: #{tpu_custom_call.1} parent=5 // pred_check
      %p378 = pneg %p377
    $region38: #{tpu_custom_call.1} parent=5 // pred_check_branch
      %380 = sbr.rel (%p378) target = $region40
    $region39: #{tpu_custom_call.1} parent=5 // pred_region
      %s381 = ssub.s32 %s9, 2
      // Predicated region
      $region41: #{tpu_custom_call.1} parent=39 // pred_check
        %p382 = pneg %p124
      $region42: #{tpu_custom_call.1} parent=39 // pred_check_branch
        %384 = sbr.rel (%p382) target = $region44
      $region43: #{tpu_custom_call.1} parent=39 // pred_region
        %s385 = smul.u32 8, %s21
        %p386 = scmp.lt.s32.totalorder %s20, 1
        %s387 = scalar_select %p386, %s20, 1
        %p388 = scmp.lt.s32.totalorder %s385, 15
        %s389 = scalar_select %p388, %s385, 15
        %s390 = smul.addr %s387, 16
        %s391 = sadd.s32 %s389, %s390
        %s392 = smul.addr %s391, 4
        %s393 = scalar_lea.vmem %s3, %s392
      $region44: #{tpu_custom_call.1} parent=39 // pred_fallthru
        _
    $region40: #{tpu_custom_call.1} parent=5 // pred_fallthru
      _
  $region6: #{tpu_custom_call.1} parent=0 // loop_footer
    %s13 = sadd.s32 1, %s9
  $region7: #{tpu_custom_call.1} parent=0 // loop_footer_branch
    %8 = sbr.rel target = $region3
  $region8: #{tpu_custom_call.1} parent=0 // loop_exit
    _

</llo_original>
